<compile_context>
chip_gen: v7x
topology: tpu7x:2x2x1
jax: 0.10.0
libtpu: 0.0.40
codegen_flags: <defaults>
</compile_context>

<pallas_src>
import math

import jax
import jax.numpy as jnp
from jax.experimental import pallas as pl
from jax.experimental.pallas import tpu as pltpu

# ----------------------------- sizes -----------------------------------------
BATCH = 8
SEQ = 8                    # number of RNN timesteps fused into one pallas_call
XY_SIZE = 2
PIX_SIZE = 36              # shape/pixel feature size fed to pix_embedding
IN_SIZE = XY_SIZE + PIX_SIZE          # 38
HIDDEN = 32                # hidden_size == embedding_size (mult=False)
HALF = HIDDEN // 2         # 16  (each stream's embedding width)
MAP_SIZE = 16
OUTPUT_SIZE = 8
SLAB = 128                 # lane-dense packed output width (one vreg of lanes)

# column offsets inside the packed [B, 128] per-step output slab
NUM_OFF = 0
PIX_OFF = NUM_OFF + OUTPUT_SIZE        # 8
MAP_OFF = PIX_OFF + HALF               # 24
HID_OFF = MAP_OFF + MAP_SIZE           # 40
X_OFF = HID_OFF + HIDDEN               # 72
PEN_OFF = X_OFF + HIDDEN               # 104
PAD_OFF = PEN_OFF + MAP_SIZE           # 120  (lanes 120..127 are zero padding)


# ----------------------------- kernel -----------------------------------------
def rnn2stream_seq_kernel(
    # inputs
    x_ref,                      # (1, B, IN_SIZE)  current timestep input
    h0_ref,                     # (B, HIDDEN)      initial hidden state (resident)
    w_emb_ref, b_emb_ref,       # (IN_SIZE, H), (1, H)   block-diag fused xy/pix embeddings
    w_joint_ref, b_joint_ref,   # (H, H), (1, H)         joint_embedding
    w_rx_ref, w_rh_ref, b_r_ref,  # (H, 2H), (H, 2H), (1, 2H)  fused RNN i2h||i2o
    w_map_ref, b_map_ref,       # (H, MAP), (1, MAP)     map_readout
    w_num_ref,                  # (MAP, OUT)             num_readout (bias=False)
    # output
    out_ref,                    # (1, B, SLAB)  packed lane-dense slab for this step
    # scratch
    h_scr,                      # VMEM (B, HIDDEN): hidden carried across grid steps
):
    t = pl.program_id(0)
    lrelu = lambda v: jnp.where(v > 0, v, 0.1 * v)          # nn.LeakyReLU(0.1)
    dot = lambda a, b: jnp.dot(a, b, preferred_element_type=jnp.float32)

    @pl.when(t == 0)
    def _():
        h_scr[...] = h0_ref[...]

    x = x_ref[0]                 # (B, IN_SIZE) = cat(xy, pix)
    h = h_scr[...]

    # xy/pix embeddings fused into one block-diagonal matmul:
    #   emb[:, :16]  = LReLU(xy_embedding(xy)),  emb[:, 16:] = LReLU(pix_embedding(pix))
    # emb is exactly `combined = cat(xy, pix)` of the PyTorch forward.
    emb = lrelu(dot(x, w_emb_ref[...]) + b_emb_ref[...])            # (B, H)
    pix_e = emb[:, HALF:HIDDEN]                                      # returned `pix`

    joint = lrelu(dot(emb, w_joint_ref[...]) + b_joint_ref[...])     # (B, H)

    # RNN cell on cat(joint, hidden); i2h and i2o fused along the output axis so the
    # step costs one dot(joint,.) + one dot(h,.) instead of four small matmuls.
    # TODO(synk): the RNN class is not given in the spec; a tutorial-style cell is
    #             assumed: hidden' = tanh(i2h(cat(x, h))), out = i2o(cat(x, h)).
    z = dot(joint, w_rx_ref[...]) + dot(h, w_rh_ref[...]) + b_r_ref[...]   # (B, 2H)
    h_new = jnp.tanh(z[:, :HIDDEN])
    rnn_out = z[:, HIDDEN:]                  # drop_layer(p=0) -> identity

    h_scr[...] = h_new                       # carry hidden to the next timestep

    map_ = dot(rnn_out, w_map_ref[...]) + b_map_ref[...]             # (B, MAP)
    sig = lrelu(map_)                                                # sig=False -> LReLU
    penult = sig                                                     # par=False, detach=False
    num = dot(sig, w_num_ref[...])                                   # (B, OUT), bias=False

    # Pack all six sub-128-lane outputs into one lane-dense [B, 128] slab
    # (single 128-lane writeback DMA per step; sliced apart in the wrapper).
    out_ref[0, :, NUM_OFF:NUM_OFF + OUTPUT_SIZE] = num
    out_ref[0, :, PIX_OFF:PIX_OFF + HALF] = pix_e
    out_ref[0, :, MAP_OFF:MAP_OFF + MAP_SIZE] = map_
    out_ref[0, :, HID_OFF:HID_OFF + HIDDEN] = h_new
    out_ref[0, :, X_OFF:X_OFF + HIDDEN] = rnn_out
    out_ref[0, :, PEN_OFF:PEN_OFF + MAP_SIZE] = penult
    out_ref[0, :, PAD_OFF:SLAB] = jnp.zeros((BATCH, SLAB - PAD_OFF), jnp.float32)


# ----------------------------- wrapper -----------------------------------------
def rnn_classifier_2stream_forward(x_seq, hidden0, packed):
    """x_seq: [SEQ, B, IN_SIZE], hidden0: [B, HIDDEN], packed: fused weights."""
    (w_emb, b_emb, w_joint, b_joint, w_rx, w_rh, b_r, w_map, b_map, w_num) = packed
    seq = x_seq.shape[0]

    def resident(a):
        # Full-array block whose index never changes -> DMA'd once, stays in VMEM.
        n = a.ndim
        return pl.BlockSpec(a.shape, lambda t, _n=n: (0,) * _n)

    grid_spec = pltpu.PrefetchScalarGridSpec(
        num_scalar_prefetch=0,
        grid=(seq,),
        in_specs=[
            pl.BlockSpec((1, BATCH, IN_SIZE), lambda t: (t, 0, 0)),   # per-step input
            resident(hidden0),
            resident(w_emb), resident(b_emb),
            resident(w_joint), resident(b_joint),
            resident(w_rx), resident(w_rh), resident(b_r),
            resident(w_map), resident(b_map),
            resident(w_num),
        ],
        out_specs=pl.BlockSpec((1, BATCH, SLAB), lambda t: (t, 0, 0)),
        scratch_shapes=[pltpu.VMEM((BATCH, HIDDEN), jnp.float32)],
    )

    slab = pl.pallas_call(
        rnn2stream_seq_kernel,
        out_shape=jax.ShapeDtypeStruct((seq, BATCH, SLAB), jnp.float32),
        grid_spec=grid_spec,
        compiler_params=pltpu.CompilerParams(
            # hidden is carried across the timestep axis -> sequential
            dimension_semantics=("arbitrary",),
        ),
    )(x_seq, hidden0, w_emb, b_emb, w_joint, b_joint, w_rx, w_rh, b_r,
      w_map, b_map, w_num)

    num = slab[:, :, NUM_OFF:NUM_OFF + OUTPUT_SIZE]
    pix_e = slab[:, :, PIX_OFF:PIX_OFF + HALF]
    map_ = slab[:, :, MAP_OFF:MAP_OFF + MAP_SIZE]
    hidden = slab[:, :, HID_OFF:HID_OFF + HIDDEN]
    x_out = slab[:, :, X_OFF:X_OFF + HIDDEN]
    penult = slab[:, :, PEN_OFF:PEN_OFF + MAP_SIZE]
    return num, pix_e, map_, hidden, x_out, penult


# ----------------------------- params ------------------------------------------
def _linear(key, fan_in, fan_out, bias=True):
    """PyTorch nn.Linear-style init, stored transposed: W:[in,out], b:[1,out]."""
    bound = 1.0 / math.sqrt(fan_in)
    kw, kb = jax.random.split(key)
    w = jax.random.uniform(kw, (fan_in, fan_out), jnp.float32, -bound, bound)
    if not bias:
        return w, None
    b = jax.random.uniform(kb, (1, fan_out), jnp.float32, -bound, bound)
    return w, b


def make_raw_params(key):
    ks = jax.random.split(key, 7)
    p = {}
    p["w_xy"], p["b_xy"] = _linear(ks[0], XY_SIZE, HALF)            # xy_embedding
    p["w_px"], p["b_px"] = _linear(ks[1], PIX_SIZE, HALF)           # pix_embedding
    p["w_j"], p["b_j"] = _linear(ks[2], HIDDEN, HIDDEN)             # joint_embedding
    # RNN cell: Linear(embedding+hidden, hidden) applied to cat(x, h)
    p["w_ih"], p["b_ih"] = _linear(ks[3], HIDDEN + HIDDEN, HIDDEN)  # i2h
    p["w_io"], p["b_io"] = _linear(ks[4], HIDDEN + HIDDEN, HIDDEN)  # i2o
    p["w_map"], p["b_map"] = _linear(ks[5], HIDDEN, MAP_SIZE)       # map_readout
    p["w_num"], _ = _linear(ks[6], MAP_SIZE, OUTPUT_SIZE, bias=False)  # num_readout
    return p


def pack_params(p):
    """Host-side weight fusion (done once, outside the kernel)."""
    # xy/pix embeddings -> one block-diagonal [IN_SIZE, HIDDEN] weight.
    w_emb = jnp.zeros((IN_SIZE, HIDDEN), jnp.float32)
    w_emb = w_emb.at[:XY_SIZE, :HALF].set(p["w_xy"])
    w_emb = w_emb.at[XY_SIZE:, HALF:].set(p["w_px"])
    b_emb = jnp.concatenate([p["b_xy"], p["b_px"]], axis=-1)                    # [1, H]
    # RNN i2h / i2o fused on the output axis, split over cat(x, h) on the input axis.
    w_rx = jnp.concatenate([p["w_ih"][:HIDDEN], p["w_io"][:HIDDEN]], axis=-1)   # [H, 2H]
    w_rh = jnp.concatenate([p["w_ih"][HIDDEN:], p["w_io"][HIDDEN:]], axis=-1)   # [H, 2H]
    b_r = jnp.concatenate([p["b_ih"], p["b_io"]], axis=-1)                      # [1, 2H]
    return (w_emb, b_emb, p["w_j"], p["b_j"], w_rx, w_rh, b_r,
            p["w_map"], p["b_map"], p["w_num"])


# ----------------------------- pure-JAX reference -------------------------------
def reference_forward(x_seq, hidden0, p):
    lrelu = lambda v: jnp.where(v > 0, v, 0.1 * v)
    h = hidden0
    outs = []
    for t in range(x_seq.shape[0]):
        x = x_seq[t]
        xy, pix = x[:, :XY_SIZE], x[:, XY_SIZE:]
        xy_e = lrelu(xy @ p["w_xy"] + p["b_xy"])
        pix_e = lrelu(pix @ p["w_px"] + p["b_px"])
        combined = jnp.concatenate([xy_e, pix_e], axis=-1)
        joint = lrelu(combined @ p["w_j"] + p["b_j"])
        cat = jnp.concatenate([joint, h], axis=-1)
        h = jnp.tanh(cat @ p["w_ih"] + p["b_ih"])
        rnn_out = cat @ p["w_io"] + p["b_io"]
        map_ = rnn_out @ p["w_map"] + p["b_map"]
        sig = lrelu(map_)
        penult = sig
        num = sig @ p["w_num"]
        outs.append((num, pix_e, map_, h, rnn_out, penult))
    return tuple(jnp.stack([o[i] for o in outs], axis=0) for i in range(6))


# ----------------------------- main ---------------------------------------------
if __name__ == "__main__":
    key = jax.random.PRNGKey(0)
    k_x, k_h, k_p = jax.random.split(key, 3)

    x_seq = jax.random.normal(k_x, (SEQ, BATCH, IN_SIZE), jnp.float32)
    hidden0 = jax.random.normal(k_h, (BATCH, HIDDEN), jnp.float32)
    raw = make_raw_params(k_p)
    packed = pack_params(raw)

    fwd = jax.jit(rnn_classifier_2stream_forward)
    outs = jax.block_until_ready(fwd(x_seq, hidden0, packed))

    refs = reference_forward(x_seq, hidden0, raw)
    names = ("num", "pix", "map", "hidden", "x", "penult")
    for name, o, r in zip(names, outs, refs):
        assert o.shape == r.shape and o.dtype == r.dtype, name
        assert jnp.allclose(o, r, rtol=1e-2, atol=1e-2), f"mismatch vs reference: {name}"

    print("KERNEL_OK")
</pallas_src>

<mosaic_0001>
module attributes {stable_mosaic.version = 11 : i64} {
  func.func @rnn2stream_seq_kernel(%arg0: i32, %arg1: memref<1x8x38xf32, #tpu.memory_space<vmem>>, %arg2: memref<8x32xf32, #tpu.memory_space<vmem>>, %arg3: memref<38x32xf32, #tpu.memory_space<vmem>>, %arg4: memref<1x32xf32, #tpu.memory_space<vmem>>, %arg5: memref<32x32xf32, #tpu.memory_space<vmem>>, %arg6: memref<1x32xf32, #tpu.memory_space<vmem>>, %arg7: memref<32x64xf32, #tpu.memory_space<vmem>>, %arg8: memref<32x64xf32, #tpu.memory_space<vmem>>, %arg9: memref<1x64xf32, #tpu.memory_space<vmem>>, %arg10: memref<32x16xf32, #tpu.memory_space<vmem>>, %arg11: memref<1x16xf32, #tpu.memory_space<vmem>>, %arg12: memref<16x8xf32, #tpu.memory_space<vmem>>, %arg13: memref<1x8x128xf32, #tpu.memory_space<vmem>>, %arg14: memref<8x32xf32, #tpu.memory_space<vmem>>) attributes {dimension_semantics = [#tpu.dimension_semantics<arbitrary>], iteration_bounds = array<i64: 8>, scalar_prefetch = 0 : i64, scratch_operands = 1 : i64, tpu.core_type = #tpu.core_type<tc>, window_params = [{transform_indices = @transform_0, window_bounds = array<i64: 1, 8, 38>}, {pipeline_mode = #tpu.pipeline_mode<synchronous>, transform_indices = @transform_1, window_bounds = array<i64: 8, 32>}, {pipeline_mode = #tpu.pipeline_mode<synchronous>, transform_indices = @transform_2, window_bounds = array<i64: 38, 32>}, {pipeline_mode = #tpu.pipeline_mode<synchronous>, transform_indices = @transform_3, window_bounds = array<i64: 1, 32>}, {pipeline_mode = #tpu.pipeline_mode<synchronous>, transform_indices = @transform_4, window_bounds = array<i64: 32, 32>}, {pipeline_mode = #tpu.pipeline_mode<synchronous>, transform_indices = @transform_5, window_bounds = array<i64: 1, 32>}, {pipeline_mode = #tpu.pipeline_mode<synchronous>, transform_indices = @transform_6, window_bounds = array<i64: 32, 64>}, {pipeline_mode = #tpu.pipeline_mode<synchronous>, transform_indices = @transform_7, window_bounds = array<i64: 32, 64>}, {pipeline_mode = #tpu.pipeline_mode<synchronous>, transform_indices = @transform_8, window_bounds = array<i64: 1, 64>}, {pipeline_mode = #tpu.pipeline_mode<synchronous>, transform_indices = @transform_9, window_bounds = array<i64: 32, 16>}, {pipeline_mode = #tpu.pipeline_mode<synchronous>, transform_indices = @transform_10, window_bounds = array<i64: 1, 16>}, {pipeline_mode = #tpu.pipeline_mode<synchronous>, transform_indices = @transform_11, window_bounds = array<i64: 16, 8>}, {transform_indices = @transform_12, window_bounds = array<i64: 1, 8, 128>}]} {
    %c0_i32 = arith.constant 0 : i32
    %0 = arith.cmpi eq, %arg0, %c0_i32 : i32
    %1 = arith.extui %0 : i1 to i32
    %c0_i32_0 = arith.constant 0 : i32
    %2 = arith.cmpi ne, %1, %c0_i32_0 : i32
    scf.if %2 {
      %c0_54 = arith.constant 0 : index
      %c0_55 = arith.constant 0 : index
      %73 = vector.load %arg2[%c0_54, %c0_55] : memref<8x32xf32, #tpu.memory_space<vmem>>, vector<8x32xf32>
      %c0_56 = arith.constant 0 : index
      %c0_57 = arith.constant 0 : index
      %74 = vector.load %arg14[%c0_56, %c0_57] : memref<8x32xf32, #tpu.memory_space<vmem>>, vector<8x32xf32>
      tpu.vector_store %arg14[%c0_56, %c0_57], %73 {strides = array<i32>} : memref<8x32xf32, #tpu.memory_space<vmem>>, vector<8x32xf32>,
    } else {
    }
    %c0 = arith.constant 0 : index
    %c0_1 = arith.constant 0 : index
    %c0_2 = arith.constant 0 : index
    %3 = vector.load %arg1[%c0, %c0_1, %c0_2] : memref<1x8x38xf32, #tpu.memory_space<vmem>>, vector<1x8x38xf32>
    %4 = vector.shape_cast %3 : vector<1x8x38xf32> to vector<8x38xf32>
    %c0_3 = arith.constant 0 : index
    %c0_4 = arith.constant 0 : index
    %5 = vector.load %arg14[%c0_3, %c0_4] : memref<8x32xf32, #tpu.memory_space<vmem>>, vector<8x32xf32>
    %c0_5 = arith.constant 0 : index
    %c0_6 = arith.constant 0 : index
    %6 = vector.load %arg3[%c0_5, %c0_6] : memref<38x32xf32, #tpu.memory_space<vmem>>, vector<38x32xf32>
    %cst = arith.constant dense<0.000000e+00> : vector<8x32xf32>
    %7 = tpu.matmul %4, %6, %cst {dimension_numbers = #tpu.dot_dimension_numbers<[1], [0], [0], [1], [0, 0, 1, 1], [], []>} : vector<8x38xf32>, vector<38x32xf32>, vector<8x32xf32> -> vector<8x32xf32>
    %c0_7 = arith.constant 0 : index
    %c0_8 = arith.constant 0 : index
    %8 = vector.load %arg4[%c0_7, %c0_8] : memref<1x32xf32, #tpu.memory_space<vmem>>, vector<1x32xf32>
    %9 = vector.broadcast %8 : vector<1x32xf32> to vector<8x32xf32>
    %10 = arith.addf %7, %9 : vector<8x32xf32>
    %cst_9 = arith.constant 0.000000e+00 : f32
    %11 = vector.broadcast %cst_9 : f32 to vector<8x32xf32>
    %12 = arith.cmpf ogt, %10, %11 : vector<8x32xf32>
    %cst_10 = arith.constant 1.000000e-01 : f32
    %13 = vector.broadcast %cst_10 : f32 to vector<8x32xf32>
    %14 = arith.mulf %13, %10 : vector<8x32xf32>
    %15 = arith.select %12, %10, %14 : vector<8x32xi1>, vector<8x32xf32>
    %16 = vector.extract_strided_slice %15 {offsets = [0, 16], sizes = [8, 16], strides = [1, 1]} : vector<8x32xf32> to vector<8x16xf32>
    %c0_11 = arith.constant 0 : index
    %c0_12 = arith.constant 0 : index
    %17 = vector.load %arg5[%c0_11, %c0_12] : memref<32x32xf32, #tpu.memory_space<vmem>>, vector<32x32xf32>
    %cst_13 = arith.constant dense<0.000000e+00> : vector<8x32xf32>
    %18 = tpu.matmul %15, %17, %cst_13 {dimension_numbers = #tpu.dot_dimension_numbers<[1], [0], [0], [1], [0, 0, 1, 1], [], []>} : vector<8x32xf32>, vector<32x32xf32>, vector<8x32xf32> -> vector<8x32xf32>
    %c0_14 = arith.constant 0 : index
    %c0_15 = arith.constant 0 : index
    %19 = vector.load %arg6[%c0_14, %c0_15] : memref<1x32xf32, #tpu.memory_space<vmem>>, vector<1x32xf32>
    %20 = vector.broadcast %19 : vector<1x32xf32> to vector<8x32xf32>
    %21 = arith.addf %18, %20 : vector<8x32xf32>
    %cst_16 = arith.constant 0.000000e+00 : f32
    %22 = vector.broadcast %cst_16 : f32 to vector<8x32xf32>
    %23 = arith.cmpf ogt, %21, %22 : vector<8x32xf32>
    %cst_17 = arith.constant 1.000000e-01 : f32
    %24 = vector.broadcast %cst_17 : f32 to vector<8x32xf32>
    %25 = arith.mulf %24, %21 : vector<8x32xf32>
    %26 = arith.select %23, %21, %25 : vector<8x32xi1>, vector<8x32xf32>
    %c0_18 = arith.constant 0 : index
    %c0_19 = arith.constant 0 : index
    %27 = vector.load %arg7[%c0_18, %c0_19] : memref<32x64xf32, #tpu.memory_space<vmem>>, vector<32x64xf32>
    %cst_20 = arith.constant dense<0.000000e+00> : vector<8x64xf32>
    %28 = tpu.matmul %26, %27, %cst_20 {dimension_numbers = #tpu.dot_dimension_numbers<[1], [0], [0], [1], [0, 0, 1, 1], [], []>} : vector<8x32xf32>, vector<32x64xf32>, vector<8x64xf32> -> vector<8x64xf32>
    %c0_21 = arith.constant 0 : index
    %c0_22 = arith.constant 0 : index
    %29 = vector.load %arg8[%c0_21, %c0_22] : memref<32x64xf32, #tpu.memory_space<vmem>>, vector<32x64xf32>
    %cst_23 = arith.constant dense<0.000000e+00> : vector<8x64xf32>
    %30 = tpu.matmul %5, %29, %cst_23 {dimension_numbers = #tpu.dot_dimension_numbers<[1], [0], [0], [1], [0, 0, 1, 1], [], []>} : vector<8x32xf32>, vector<32x64xf32>, vector<8x64xf32> -> vector<8x64xf32>
    %31 = arith.addf %28, %30 : vector<8x64xf32>
    %c0_24 = arith.constant 0 : index
    %c0_25 = arith.constant 0 : index
    %32 = vector.load %arg9[%c0_24, %c0_25] : memref<1x64xf32, #tpu.memory_space<vmem>>, vector<1x64xf32>
    %33 = vector.broadcast %32 : vector<1x64xf32> to vector<8x64xf32>
    %34 = arith.addf %31, %33 : vector<8x64xf32>
    %35 = vector.extract_strided_slice %34 {offsets = [0, 0], sizes = [8, 32], strides = [1, 1]} : vector<8x64xf32> to vector<8x32xf32>
    %36 = math.tanh %35 : vector<8x32xf32>
    %37 = vector.extract_strided_slice %34 {offsets = [0, 32], sizes = [8, 32], strides = [1, 1]} : vector<8x64xf32> to vector<8x32xf32>
    %c0_26 = arith.constant 0 : index
    %c0_27 = arith.constant 0 : index
    %38 = vector.load %arg14[%c0_26, %c0_27] : memref<8x32xf32, #tpu.memory_space<vmem>>, vector<8x32xf32>
    tpu.vector_store %arg14[%c0_26, %c0_27], %36 {strides = array<i32>} : memref<8x32xf32, #tpu.memory_space<vmem>>, vector<8x32xf32>,
    %c0_28 = arith.constant 0 : index
    %c0_29 = arith.constant 0 : index
    %39 = vector.load %arg10[%c0_28, %c0_29] : memref<32x16xf32, #tpu.memory_space<vmem>>, vector<32x16xf32>
    %cst_30 = arith.constant dense<0.000000e+00> : vector<8x16xf32>
    %40 = tpu.matmul %37, %39, %cst_30 {dimension_numbers = #tpu.dot_dimension_numbers<[1], [0], [0], [1], [0, 0, 1, 1], [], []>} : vector<8x32xf32>, vector<32x16xf32>, vector<8x16xf32> -> vector<8x16xf32>
    %c0_31 = arith.constant 0 : index
    %c0_32 = arith.constant 0 : index
    %41 = vector.load %arg11[%c0_31, %c0_32] : memref<1x16xf32, #tpu.memory_space<vmem>>, vector<1x16xf32>
    %42 = vector.broadcast %41 : vector<1x16xf32> to vector<8x16xf32>
    %43 = arith.addf %40, %42 : vector<8x16xf32>
    %cst_33 = arith.constant 0.000000e+00 : f32
    %44 = vector.broadcast %cst_33 : f32 to vector<8x16xf32>
    %45 = arith.cmpf ogt, %43, %44 : vector<8x16xf32>
    %cst_34 = arith.constant 1.000000e-01 : f32
    %46 = vector.broadcast %cst_34 : f32 to vector<8x16xf32>
    %47 = arith.mulf %46, %43 : vector<8x16xf32>
    %48 = arith.select %45, %43, %47 : vector<8x16xi1>, vector<8x16xf32>
    %c0_35 = arith.constant 0 : index
    %c0_36 = arith.constant 0 : index
    %49 = vector.load %arg12[%c0_35, %c0_36] : memref<16x8xf32, #tpu.memory_space<vmem>>, vector<16x8xf32>
    %cst_37 = arith.constant dense<0.000000e+00> : vector<8x8xf32>
    %50 = tpu.matmul %48, %49, %cst_37 {dimension_numbers = #tpu.dot_dimension_numbers<[1], [0], [0], [1], [0, 0, 1, 1], [], []>} : vector<8x16xf32>, vector<16x8xf32>, vector<8x8xf32> -> vector<8x8xf32>
    %c0_38 = arith.constant 0 : index
    %c0_39 = arith.constant 0 : index
    %c0_40 = arith.constant 0 : index
    %51 = vector.load %arg13[%c0_38, %c0_39, %c0_40] : memref<1x8x128xf32, #tpu.memory_space<vmem>>, vector<1x8x8xf32>
    %52 = vector.shape_cast %51 : vector<1x8x8xf32> to vector<8x8xf32>
    %53 = vector.shape_cast %50 : vector<8x8xf32> to vector<1x8x8xf32>
    tpu.vector_store %arg13[%c0_38, %c0_39, %c0_40], %53 {strides = array<i32>} : memref<1x8x128xf32, #tpu.memory_space<vmem>>, vector<1x8x8xf32>,
    %c0_41 = arith.constant 0 : index
    %c0_42 = arith.constant 0 : index
    %c8 = arith.constant 8 : index
    %54 = vector.load %arg13[%c0_41, %c0_42, %c8] : memref<1x8x128xf32, #tpu.memory_space<vmem>>, vector<1x8x16xf32>
    %55 = vector.shape_cast %54 : vector<1x8x16xf32> to vector<8x16xf32>
    %56 = vector.shape_cast %16 : vector<8x16xf32> to vector<1x8x16xf32>
    tpu.vector_store %arg13[%c0_41, %c0_42, %c8], %56 {strides = array<i32>} : memref<1x8x128xf32, #tpu.memory_space<vmem>>, vector<1x8x16xf32>,
    %c0_43 = arith.constant 0 : index
    %c0_44 = arith.constant 0 : index
    %c24 = arith.constant 24 : index
    %57 = vector.load %arg13[%c0_43, %c0_44, %c24] : memref<1x8x128xf32, #tpu.memory_space<vmem>>, vector<1x8x16xf32>
    %58 = vector.shape_cast %57 : vector<1x8x16xf32> to vector<8x16xf32>
    %59 = vector.shape_cast %43 : vector<8x16xf32> to vector<1x8x16xf32>
    tpu.vector_store %arg13[%c0_43, %c0_44, %c24], %59 {strides = array<i32>} : memref<1x8x128xf32, #tpu.memory_space<vmem>>, vector<1x8x16xf32>,
    %c0_45 = arith.constant 0 : index
    %c0_46 = arith.constant 0 : index
    %c40 = arith.constant 40 : index
    %60 = vector.load %arg13[%c0_45, %c0_46, %c40] : memref<1x8x128xf32, #tpu.memory_space<vmem>>, vector<1x8x32xf32>
    %61 = vector.shape_cast %60 : vector<1x8x32xf32> to vector<8x32xf32>
    %62 = vector.shape_cast %36 : vector<8x32xf32> to vector<1x8x32xf32>
    tpu.vector_store %arg13[%c0_45, %c0_46, %c40], %62 {strides = array<i32>} : memref<1x8x128xf32, #tpu.memory_space<vmem>>, vector<1x8x32xf32>,
    %c0_47 = arith.constant 0 : index
    %c0_48 = arith.constant 0 : index
    %c72 = arith.constant 72 : index
    %63 = vector.load %arg13[%c0_47, %c0_48, %c72] : memref<1x8x128xf32, #tpu.memory_space<vmem>>, vector<1x8x32xf32>
    %64 = vector.shape_cast %63 : vector<1x8x32xf32> to vector<8x32xf32>
    %65 = vector.shape_cast %37 : vector<8x32xf32> to vector<1x8x32xf32>
    tpu.vector_store %arg13[%c0_47, %c0_48, %c72], %65 {strides = array<i32>} : memref<1x8x128xf32, #tpu.memory_space<vmem>>, vector<1x8x32xf32>,
    %c0_49 = arith.constant 0 : index
    %c0_50 = arith.constant 0 : index
    %c104 = arith.constant 104 : index
    %66 = vector.load %arg13[%c0_49, %c0_50, %c104] : memref<1x8x128xf32, #tpu.memory_space<vmem>>, vector<1x8x16xf32>
    %67 = vector.shape_cast %66 : vector<1x8x16xf32> to vector<8x16xf32>
    %68 = vector.shape_cast %48 : vector<8x16xf32> to vector<1x8x16xf32>
    tpu.vector_store %arg13[%c0_49, %c0_50, %c104], %68 {strides = array<i32>} : memref<1x8x128xf32, #tpu.memory_space<vmem>>, vector<1x8x16xf32>,
    %cst_51 = arith.constant 0.000000e+00 : f32
    %69 = vector.broadcast %cst_51 : f32 to vector<8x8xf32>
    %c0_52 = arith.constant 0 : index
    %c0_53 = arith.constant 0 : index
    %c120 = arith.constant 120 : index
    %70 = vector.load %arg13[%c0_52, %c0_53, %c120] : memref<1x8x128xf32, #tpu.memory_space<vmem>>, vector<1x8x8xf32>
    %71 = vector.shape_cast %70 : vector<1x8x8xf32> to vector<8x8xf32>
    %72 = vector.shape_cast %69 : vector<8x8xf32> to vector<1x8x8xf32>
    tpu.vector_store %arg13[%c0_52, %c0_53, %c120], %72 {strides = array<i32>} : memref<1x8x128xf32, #tpu.memory_space<vmem>>, vector<1x8x8xf32>,
    return
  }
  func.func @transform_0(%arg0: i32) -> (i32, i32, i32) {
    %c0_i32 = arith.constant 0 : i32
    %c0_i32_0 = arith.constant 0 : i32
    %c0_i32_1 = arith.constant 0 : i32
    return %arg0, %c0_i32, %c0_i32_0 : i32, i32, i32
  }
  func.func @transform_1(%arg0: i32) -> (i32, i32) {
    %c0_i32 = arith.constant 0 : i32
    %c0_i32_0 = arith.constant 0 : i32
    %c0_i32_1 = arith.constant 0 : i32
    return %c0_i32, %c0_i32_0 : i32, i32
  }
  func.func @transform_2(%arg0: i32) -> (i32, i32) {
    %c0_i32 = arith.constant 0 : i32
    %c0_i32_0 = arith.constant 0 : i32
    %c0_i32_1 = arith.constant 0 : i32
    return %c0_i32, %c0_i32_0 : i32, i32
  }
  func.func @transform_3(%arg0: i32) -> (i32, i32) {
    %c0_i32 = arith.constant 0 : i32
    %c0_i32_0 = arith.constant 0 : i32
    %c0_i32_1 = arith.constant 0 : i32
    return %c0_i32, %c0_i32_0 : i32, i32
  }
  func.func @transform_4(%arg0: i32) -> (i32, i32) {
    %c0_i32 = arith.constant 0 : i32
    %c0_i32_0 = arith.constant 0 : i32
    %c0_i32_1 = arith.constant 0 : i32
    return %c0_i32, %c0_i32_0 : i32, i32
  }
  func.func @transform_5(%arg0: i32) -> (i32, i32) {
    %c0_i32 = arith.constant 0 : i32
    %c0_i32_0 = arith.constant 0 : i32
    %c0_i32_1 = arith.constant 0 : i32
    return %c0_i32, %c0_i32_0 : i32, i32
  }
  func.func @transform_6(%arg0: i32) -> (i32, i32) {
    %c0_i32 = arith.constant 0 : i32
    %c0_i32_0 = arith.constant 0 : i32
    %c0_i32_1 = arith.constant 0 : i32
    return %c0_i32, %c0_i32_0 : i32, i32
  }
  func.func @transform_7(%arg0: i32) -> (i32, i32) {
    %c0_i32 = arith.constant 0 : i32
    %c0_i32_0 = arith.constant 0 : i32
    %c0_i32_1 = arith.constant 0 : i32
    return %c0_i32, %c0_i32_0 : i32, i32
  }
  func.func @transform_8(%arg0: i32) -> (i32, i32) {
    %c0_i32 = arith.constant 0 : i32
    %c0_i32_0 = arith.constant 0 : i32
    %c0_i32_1 = arith.constant 0 : i32
    return %c0_i32, %c0_i32_0 : i32, i32
  }
  func.func @transform_9(%arg0: i32) -> (i32, i32) {
    %c0_i32 = arith.constant 0 : i32
    %c0_i32_0 = arith.constant 0 : i32
    %c0_i32_1 = arith.constant 0 : i32
    return %c0_i32, %c0_i32_0 : i32, i32
  }
  func.func @transform_10(%arg0: i32) -> (i32, i32) {
    %c0_i32 = arith.constant 0 : i32
    %c0_i32_0 = arith.constant 0 : i32
    %c0_i32_1 = arith.constant 0 : i32
    return %c0_i32, %c0_i32_0 : i32, i32
  }
  func.func @transform_11(%arg0: i32) -> (i32, i32) {
    %c0_i32 = arith.constant 0 : i32
    %c0_i32_0 = arith.constant 0 : i32
    %c0_i32_1 = arith.constant 0 : i32
    return %c0_i32, %c0_i32_0 : i32, i32
  }
  func.func @transform_12(%arg0: i32) -> (i32, i32, i32) {
    %c0_i32 = arith.constant 0 : i32
    %c0_i32_0 = arith.constant 0 : i32
    %c0_i32_1 = arith.constant 0 : i32
    return %arg0, %c0_i32, %c0_i32_0 : i32, i32, i32
  }
}

</mosaic_0001>

<llo_original>
// kernel: rnn_classifier_2stream_forward.1
$region0: #{rnn_classifier_2stream_forward.1}
  #allocation0 [shape = 'u32[]', space=smem, size = 0x4, offset = 0x4, fixed_abs, tag = 'smem constant byte address 0x4 - core index']
  #allocation1 [shape = 'u32[144,128]{1,0:T(1,128)}', space=vmem, size = 0x12000, scoped, tag = 'internal scratch']
  #allocation2 [shape = 'f32[8,32]{1,0:T(8,128)}', space=vmem, size = 0x1000, scoped, tag = 'scratch operand']
  %s0 = inlined_call_operand.vmem [shape: f32[8,8,38], index: 0, kind: input, shape index: {}]
  %s1 = inlined_call_operand.hbm [shape: f32[8,32], index: 1, kind: input, shape index: {}]
  %s2 = inlined_call_operand.vmem [shape: f32[38,32], index: 2, kind: input, shape index: {}]
  %s3 = inlined_call_operand.vmem [shape: f32[1,32], index: 3, kind: input, shape index: {}]
  %s4 = inlined_call_operand.vmem [shape: f32[32,32], index: 4, kind: input, shape index: {}]
  %s5 = inlined_call_operand.hbm [shape: f32[1,32], index: 5, kind: input, shape index: {}]
  %s6 = inlined_call_operand.vmem [shape: f32[32,64], index: 6, kind: input, shape index: {}]
  %s7 = inlined_call_operand.hbm [shape: f32[32,64], index: 7, kind: input, shape index: {}]
  %s8 = inlined_call_operand.hbm [shape: f32[1,64], index: 8, kind: input, shape index: {}]
  %s9 = inlined_call_operand.vmem [shape: f32[32,16], index: 9, kind: input, shape index: {}]
  %s10 = inlined_call_operand.hbm [shape: f32[1,16], index: 10, kind: input, shape index: {}]
  %s11 = inlined_call_operand.vmem [shape: f32[16,8], index: 11, kind: input, shape index: {}]
  %s12 = inlined_call_operand.vmem [shape: f32[8,8,128], index: 12, kind: output, shape index: {}]
  %s13 = sld [smem:[#allocation0]]
  $region105: #{rnn_classifier_2stream_forward.1} parent=0
    _
  %s15 = ssub.s32 1, %s13
  %s16 = scalar_select 0, %s15, %s13
  $region1: #{rnn_classifier_2stream_forward.1} parent=0
    #allocation3 [shape = 'u8[4096]{0}', space=vmem, size = 0x1000, scoped, tag = 'input window, operand 1, single buffered']
    #allocation4 [shape = 's32[2]{0}', space=sflag, size = 0x8, scoped, tag = 'scoped memory for rnn_classifier_2stream_forward.1']
    #allocation5 [shape = 'u8[512]{0}', space=vmem, size = 0x400, scoped, tag = 'input window, operand 5, single buffered']
    #allocation6 [shape = 's32[1]{0}', space=sflag, size = 0x4, scoped, tag = 'scoped memory for rnn_classifier_2stream_forward.1']
    #allocation7 [shape = 'u8[16384]{0}', space=vmem, size = 0x4000, scoped, tag = 'input window, operand 7, single buffered']
    #allocation8 [shape = 'u8[512]{0}', space=vmem, size = 0x400, scoped, tag = 'input window, operand 8, single buffered']
    #allocation9 [shape = 's32[1]{0}', space=sflag, size = 0x4, scoped, tag = 'scoped memory for rnn_classifier_2stream_forward.1']
    #allocation10 [shape = 'u8[512]{0}', space=vmem, size = 0x400, scoped, tag = 'input window, operand 10, single buffered']
    %17 = vsyncpa [#allocation4], 0
    %18 = vsyncpa [#allocation6], 0
    %19 = vsyncpa [#allocation9], 0
    loop: start=0, step=1, limit=10
    $region2: #{rnn_classifier_2stream_forward.1} parent=1 // loop_pre_header
      _
    $region3: #{rnn_classifier_2stream_forward.1} parent=1 // loop_header
      %s21 = sphi 0, %s25
      %p22 = scmp.ge.s32.totalorder %s21, 10
      %s31 = sphi 0, %s33
      %s34 = sphi 0, %s31
      %s35 = sphi 0, %s34
      %s51 = sphi 0, %s35
      %s55 = sphi 0, %s55
      %s57 = sphi 0, %s55
      %s58 = sphi 0, %s57
      %s72 = sphi 0, %s58
      %s76 = sphi 0, %s76
      %s78 = sphi 0, %s76
      %s79 = sphi 0, %s78
      %s93 = sphi 0, %s79
      %s97 = sphi 0, %s97
      %s99 = sphi 0, %s97
      %s100 = sphi 0, %s99
      %s114 = sphi 0, %s100
      %s118 = sphi 0, %s118
      %s120 = sphi 0, %s118
      %s121 = sphi 0, %s120
      %s135 = sphi 0, %s121
      %s139 = sphi 0, %s139
      %s141 = sphi 0, %s139
      %s142 = sphi 0, %s141
      %s156 = sphi 0, %s142
      %s160 = sphi 0, %s160
      %s162 = sphi 0, %s160
      %s163 = sphi 0, %s162
      %s177 = sphi 0, %s163
      %s181 = sphi 0, %s181
      %s183 = sphi 0, %s181
      %s184 = sphi 0, %s183
      %s198 = sphi 0, %s184
      %s202 = sphi 0, %s202
      %s204 = sphi 0, %s202
      %s205 = sphi 0, %s204
      %s219 = sphi 0, %s205
      %s223 = sphi 0, %s223
      %s225 = sphi 0, %s223
      %s226 = sphi 0, %s225
      %s240 = sphi 0, %s226
      %s244 = sphi 0, %s244
      %s246 = sphi 0, %s244
      %s247 = sphi 0, %s246
      %s261 = sphi 0, %s247
      %s265 = sphi 0, %s265
      %s267 = sphi 0, %s265
      %s268 = sphi 0, %s267
      %s282 = sphi 0, %s268
      %s288 = sphi 0, %s290
      %s291 = sphi 0, %s288
      %s292 = sphi 0, %s291
      %s308 = sphi 0, %s292
    $region4: #{rnn_classifier_2stream_forward.1} parent=1 // loop_header_branch
      %24 = sbr.rel (%p22) target = $region8
    $region5: #{rnn_classifier_2stream_forward.1} parent=1 // loop_body
      %s26 = ssub.s32 %s21, 1
      %s27 = ssub.s32 %s21, 2
      %s28 = sadd.s32 %s21, 1
      %s29 = ssub.s32 %s21, %s28
      %p30 = scmp.eq.s32.totalorder %s29, 0
      %s32 = sadd.s32 %s31, 1
      %s33 = scalar_select %p30, %s31, %s32
      %p36 = pneg %p30
      %p37 = scmp.eq.s32.totalorder %s21, 7
      %p38 = por %p36, %p37
      %p39 = scmp.ne.s32.totalorder %s31, %s34
      %p40 = scmp.eq.s32.totalorder %s21, 0
      %p41 = por %p39, %p40
      %p42 = scmp.ne.s32.totalorder %s31, %s34
      %p43 = scmp.eq.s32.totalorder %s26, 7
      %p44 = por %p42, %p43
      %p45 = scmp.ne.s32.totalorder %s34, %s35
      %p46 = scmp.eq.s32.totalorder %s26, 0
      %p47 = por %p45, %p46
      %p48 = scmp.ne.s32.totalorder %s34, %s35
      %p49 = scmp.eq.s32.totalorder %s27, 7
      %p50 = por %p48, %p49
      %p52 = scmp.ne.s32.totalorder %s35, %s51
      %p53 = scmp.eq.s32.totalorder %s27, 0
      %p54 = por %p52, %p53
      %s56 = sadd.s32 %s55, 1
      %p59 = scmp.eq.s32.totalorder %s21, 7
      %p60 = scmp.ne.s32.totalorder %s55, %s57
      %p61 = scmp.eq.s32.totalorder %s21, 0
      %p62 = por %p60, %p61
      %p63 = scmp.ne.s32.totalorder %s55, %s57
      %p64 = scmp.eq.s32.totalorder %s26, 7
      %p65 = por %p63, %p64
      %p66 = scmp.ne.s32.totalorder %s57, %s58
      %p67 = scmp.eq.s32.totalorder %s26, 0
      %p68 = por %p66, %p67
      %p69 = scmp.ne.s32.totalorder %s57, %s58
      %p70 = scmp.eq.s32.totalorder %s27, 7
      %p71 = por %p69, %p70
      %p73 = scmp.ne.s32.totalorder %s58, %s72
      %p74 = scmp.eq.s32.totalorder %s27, 0
      %p75 = por %p73, %p74
      %s77 = sadd.s32 %s76, 1
      %p80 = scmp.eq.s32.totalorder %s21, 7
      %p81 = scmp.ne.s32.totalorder %s76, %s78
      %p82 = scmp.eq.s32.totalorder %s21, 0
      %p83 = por %p81, %p82
      %p84 = scmp.ne.s32.totalorder %s76, %s78
      %p85 = scmp.eq.s32.totalorder %s26, 7
      %p86 = por %p84, %p85
      %p87 = scmp.ne.s32.totalorder %s78, %s79
      %p88 = scmp.eq.s32.totalorder %s26, 0
      %p89 = por %p87, %p88
      %p90 = scmp.ne.s32.totalorder %s78, %s79
      %p91 = scmp.eq.s32.totalorder %s27, 7
      %p92 = por %p90, %p91
      %p94 = scmp.ne.s32.totalorder %s79, %s93
      %p95 = scmp.eq.s32.totalorder %s27, 0
      %p96 = por %p94, %p95
      %s98 = sadd.s32 %s97, 1
      %p101 = scmp.eq.s32.totalorder %s21, 7
      %p102 = scmp.ne.s32.totalorder %s97, %s99
      %p103 = scmp.eq.s32.totalorder %s21, 0
      %p104 = por %p102, %p103
      %p105 = scmp.ne.s32.totalorder %s97, %s99
      %p106 = scmp.eq.s32.totalorder %s26, 7
      %p107 = por %p105, %p106
      %p108 = scmp.ne.s32.totalorder %s99, %s100
      %p109 = scmp.eq.s32.totalorder %s26, 0
      %p110 = por %p108, %p109
      %p111 = scmp.ne.s32.totalorder %s99, %s100
      %p112 = scmp.eq.s32.totalorder %s27, 7
      %p113 = por %p111, %p112
      %p115 = scmp.ne.s32.totalorder %s100, %s114
      %p116 = scmp.eq.s32.totalorder %s27, 0
      %p117 = por %p115, %p116
      %s119 = sadd.s32 %s118, 1
      %p122 = scmp.eq.s32.totalorder %s21, 7
      %p123 = scmp.ne.s32.totalorder %s118, %s120
      %p124 = scmp.eq.s32.totalorder %s21, 0
      %p125 = por %p123, %p124
      %p126 = scmp.ne.s32.totalorder %s118, %s120
      %p127 = scmp.eq.s32.totalorder %s26, 7
      %p128 = por %p126, %p127
      %p129 = scmp.ne.s32.totalorder %s120, %s121
      %p130 = scmp.eq.s32.totalorder %s26, 0
      %p131 = por %p129, %p130
      %p132 = scmp.ne.s32.totalorder %s120, %s121
      %p133 = scmp.eq.s32.totalorder %s27, 7
      %p134 = por %p132, %p133
      %p136 = scmp.ne.s32.totalorder %s121, %s135
      %p137 = scmp.eq.s32.totalorder %s27, 0
      %p138 = por %p136, %p137
      %s140 = sadd.s32 %s139, 1
      %p143 = scmp.eq.s32.totalorder %s21, 7
      %p144 = scmp.ne.s32.totalorder %s139, %s141
      %p145 = scmp.eq.s32.totalorder %s21, 0
      %p146 = por %p144, %p145
      %p147 = scmp.ne.s32.totalorder %s139, %s141
      %p148 = scmp.eq.s32.totalorder %s26, 7
      %p149 = por %p147, %p148
      %p150 = scmp.ne.s32.totalorder %s141, %s142
      %p151 = scmp.eq.s32.totalorder %s26, 0
      %p152 = por %p150, %p151
      %p153 = scmp.ne.s32.totalorder %s141, %s142
      %p154 = scmp.eq.s32.totalorder %s27, 7
      %p155 = por %p153, %p154
      %p157 = scmp.ne.s32.totalorder %s142, %s156
      %p158 = scmp.eq.s32.totalorder %s27, 0
      %p159 = por %p157, %p158
      %s161 = sadd.s32 %s160, 1
      %p164 = scmp.eq.s32.totalorder %s21, 7
      %p165 = scmp.ne.s32.totalorder %s160, %s162
      %p166 = scmp.eq.s32.totalorder %s21, 0
      %p167 = por %p165, %p166
      %p168 = scmp.ne.s32.totalorder %s160, %s162
      %p169 = scmp.eq.s32.totalorder %s26, 7
      %p170 = por %p168, %p169
      %p171 = scmp.ne.s32.totalorder %s162, %s163
      %p172 = scmp.eq.s32.totalorder %s26, 0
      %p173 = por %p171, %p172
      %p174 = scmp.ne.s32.totalorder %s162, %s163
      %p175 = scmp.eq.s32.totalorder %s27, 7
      %p176 = por %p174, %p175
      %p178 = scmp.ne.s32.totalorder %s163, %s177
      %p179 = scmp.eq.s32.totalorder %s27, 0
      %p180 = por %p178, %p179
      %s182 = sadd.s32 %s181, 1
      %p185 = scmp.eq.s32.totalorder %s21, 7
      %p186 = scmp.ne.s32.totalorder %s181, %s183
      %p187 = scmp.eq.s32.totalorder %s21, 0
      %p188 = por %p186, %p187
      %p189 = scmp.ne.s32.totalorder %s181, %s183
      %p190 = scmp.eq.s32.totalorder %s26, 7
      %p191 = por %p189, %p190
      %p192 = scmp.ne.s32.totalorder %s183, %s184
      %p193 = scmp.eq.s32.totalorder %s26, 0
      %p194 = por %p192, %p193
      %p195 = scmp.ne.s32.totalorder %s183, %s184
      %p196 = scmp.eq.s32.totalorder %s27, 7
      %p197 = por %p195, %p196
      %p199 = scmp.ne.s32.totalorder %s184, %s198
      %p200 = scmp.eq.s32.totalorder %s27, 0
      %p201 = por %p199, %p200
      %s203 = sadd.s32 %s202, 1
      %p206 = scmp.eq.s32.totalorder %s21, 7
      %p207 = scmp.ne.s32.totalorder %s202, %s204
      %p208 = scmp.eq.s32.totalorder %s21, 0
      %p209 = por %p207, %p208
      %p210 = scmp.ne.s32.totalorder %s202, %s204
      %p211 = scmp.eq.s32.totalorder %s26, 7
      %p212 = por %p210, %p211
      %p213 = scmp.ne.s32.totalorder %s204, %s205
      %p214 = scmp.eq.s32.totalorder %s26, 0
      %p215 = por %p213, %p214
      %p216 = scmp.ne.s32.totalorder %s204, %s205
      %p217 = scmp.eq.s32.totalorder %s27, 7
      %p218 = por %p216, %p217
      %p220 = scmp.ne.s32.totalorder %s205, %s219
      %p221 = scmp.eq.s32.totalorder %s27, 0
      %p222 = por %p220, %p221
      %s224 = sadd.s32 %s223, 1
      %p227 = scmp.eq.s32.totalorder %s21, 7
      %p228 = scmp.ne.s32.totalorder %s223, %s225
      %p229 = scmp.eq.s32.totalorder %s21, 0
      %p230 = por %p228, %p229
      %p231 = scmp.ne.s32.totalorder %s223, %s225
      %p232 = scmp.eq.s32.totalorder %s26, 7
      %p233 = por %p231, %p232
      %p234 = scmp.ne.s32.totalorder %s225, %s226
      %p235 = scmp.eq.s32.totalorder %s26, 0
      %p236 = por %p234, %p235
      %p237 = scmp.ne.s32.totalorder %s225, %s226
      %p238 = scmp.eq.s32.totalorder %s27, 7
      %p239 = por %p237, %p238
      %p241 = scmp.ne.s32.totalorder %s226, %s240
      %p242 = scmp.eq.s32.totalorder %s27, 0
      %p243 = por %p241, %p242
      %s245 = sadd.s32 %s244, 1
      %p248 = scmp.eq.s32.totalorder %s21, 7
      %p249 = scmp.ne.s32.totalorder %s244, %s246
      %p250 = scmp.eq.s32.totalorder %s21, 0
      %p251 = por %p249, %p250
      %p252 = scmp.ne.s32.totalorder %s244, %s246
      %p253 = scmp.eq.s32.totalorder %s26, 7
      %p254 = por %p252, %p253
      %p255 = scmp.ne.s32.totalorder %s246, %s247
      %p256 = scmp.eq.s32.totalorder %s26, 0
      %p257 = por %p255, %p256
      %p258 = scmp.ne.s32.totalorder %s246, %s247
      %p259 = scmp.eq.s32.totalorder %s27, 7
      %p260 = por %p258, %p259
      %p262 = scmp.ne.s32.totalorder %s247, %s261
      %p263 = scmp.eq.s32.totalorder %s27, 0
      %p264 = por %p262, %p263
      %s266 = sadd.s32 %s265, 1
      %p269 = scmp.eq.s32.totalorder %s21, 7
      %p270 = scmp.ne.s32.totalorder %s265, %s267
      %p271 = scmp.eq.s32.totalorder %s21, 0
      %p272 = por %p270, %p271
      %p273 = scmp.ne.s32.totalorder %s265, %s267
      %p274 = scmp.eq.s32.totalorder %s26, 7
      %p275 = por %p273, %p274
      %p276 = scmp.ne.s32.totalorder %s267, %s268
      %p277 = scmp.eq.s32.totalorder %s26, 0
      %p278 = por %p276, %p277
      %p279 = scmp.ne.s32.totalorder %s267, %s268
      %p280 = scmp.eq.s32.totalorder %s27, 7
      %p281 = por %p279, %p280
      %p283 = scmp.ne.s32.totalorder %s268, %s282
      %p284 = scmp.eq.s32.totalorder %s27, 0
      %p285 = por %p283, %p284
      %s286 = ssub.s32 %s21, %s28
      %p287 = scmp.eq.s32.totalorder %s286, 0
      %s289 = sadd.s32 %s288, 1
      %s290 = scalar_select %p287, %s288, %s289
      %p293 = pneg %p287
      %p294 = scmp.eq.s32.totalorder %s21, 7
      %p295 = por %p293, %p294
      %p296 = scmp.ne.s32.totalorder %s288, %s291
      %p297 = scmp.eq.s32.totalorder %s21, 0
      %p298 = por %p296, %p297
      %p299 = scmp.ne.s32.totalorder %s288, %s291
      %p300 = scmp.eq.s32.totalorder %s26, 7
      %p301 = por %p299, %p300
      %p302 = scmp.ne.s32.totalorder %s291, %s292
      %p303 = scmp.eq.s32.totalorder %s26, 0
      %p304 = por %p302, %p303
      %p305 = scmp.ne.s32.totalorder %s291, %s292
      %p306 = scmp.eq.s32.totalorder %s27, 7
      %p307 = por %p305, %p306
      %p309 = scmp.ne.s32.totalorder %s292, %s308
      %p310 = scmp.eq.s32.totalorder %s27, 0
      %p311 = por %p309, %p310
      %p312 = scmp.le.s32.totalorder 1, %s21
      %p313 = scmp.lt.s32.totalorder %s21, 9
      %p314 = pnand %p312, %p313
      %p315 = pneg %p314
      // Predicated region
      $region9: #{rnn_classifier_2stream_forward.1} parent=5 // pred_check
        _
      $region10: #{rnn_classifier_2stream_forward.1} parent=5 // pred_check_branch
        %317 = sbr.rel (%p314) target = $region12
      $region11: #{rnn_classifier_2stream_forward.1} parent=5 // pred_region
        %s318 = ssub.s32 %s21, 1
        // Predicated region
        $region13: #{rnn_classifier_2stream_forward.1} parent=11 // pred_check
          %p319 = pneg %p68
        $region14: #{rnn_classifier_2stream_forward.1} parent=11 // pred_check_branch
          %321 = sbr.rel (%p319) target = $region16
        $region15: #{rnn_classifier_2stream_forward.1} parent=11 // pred_region
          %s323 = ssub.s32 128, 128
          %324 = vsyncadd [#allocation4], %s323
          %s326 = sshll.u32 [#allocation3], 4
          %s327 = int_to_ptr.vmem [resolvable:$true] %s326
          %329 = dma.hbm_to_vmem [thread:$0]  %s1, 128, %s327, [#allocation4]
        $region16: #{rnn_classifier_2stream_forward.1} parent=11 // pred_fallthru
          _
        // Predicated region
        $region17: #{rnn_classifier_2stream_forward.1} parent=11 // pred_check
          %p330 = pneg %p89
        $region18: #{rnn_classifier_2stream_forward.1} parent=11 // pred_check_branch
          %332 = sbr.rel (%p330) target = $region20
        $region19: #{rnn_classifier_2stream_forward.1} parent=11 // pred_region
          _
        $region20: #{rnn_classifier_2stream_forward.1} parent=11 // pred_fallthru
          _
        // Predicated region
        $region21: #{rnn_classifier_2stream_forward.1} parent=11 // pred_check
          %p333 = pneg %p110
        $region22: #{rnn_classifier_2stream_forward.1} parent=11 // pred_check_branch
          %335 = sbr.rel (%p333) target = $region24
        $region23: #{rnn_classifier_2stream_forward.1} parent=11 // pred_region
          _
        $region24: #{rnn_classifier_2stream_forward.1} parent=11 // pred_fallthru
          _
        // Predicated region
        $region25: #{rnn_classifier_2stream_forward.1} parent=11 // pred_check
          %p336 = pneg %p131
        $region26: #{rnn_classifier_2stream_forward.1} parent=11 // pred_check_branch
          %338 = sbr.rel (%p336) target = $region28
        $region27: #{rnn_classifier_2stream_forward.1} parent=11 // pred_region
          _
        $region28: #{rnn_classifier_2stream_forward.1} parent=11 // pred_fallthru
          _
        // Predicated region
        $region29: #{rnn_classifier_2stream_forward.1} parent=11 // pred_check
          %p339 = pneg %p152
        $region30: #{rnn_classifier_2stream_forward.1} parent=11 // pred_check_branch
          %341 = sbr.rel (%p339) target = $region32
        $region31: #{rnn_classifier_2stream_forward.1} parent=11 // pred_region
          %s343 = ssub.s32 16, 16
          %344 = vsyncadd [#allocation6], %s343
          %s346 = sshll.u32 [#allocation5], 4
          %s347 = int_to_ptr.vmem [resolvable:$true] %s346
          %349 = dma.hbm_to_vmem [thread:$0]  %s5, 16, %s347, [#allocation6]
        $region32: #{rnn_classifier_2stream_forward.1} parent=11 // pred_fallthru
          _
        // Predicated region
        $region33: #{rnn_classifier_2stream_forward.1} parent=11 // pred_check
          %p350 = pneg %p173
        $region34: #{rnn_classifier_2stream_forward.1} parent=11 // pred_check_branch
          %352 = sbr.rel (%p350) target = $region36
        $region35: #{rnn_classifier_2stream_forward.1} parent=11 // pred_region
          _
        $region36: #{rnn_classifier_2stream_forward.1} parent=11 // pred_fallthru
          _
        // Predicated region
        $region37: #{rnn_classifier_2stream_forward.1} parent=11 // pred_check
          %p353 = pneg %p194
        $region38: #{rnn_classifier_2stream_forward.1} parent=11 // pred_check_branch
          %355 = sbr.rel (%p353) target = $region40
        $region39: #{rnn_classifier_2stream_forward.1} parent=11 // pred_region
          %s357 = ssub.s32 512, 512
          %358 = vsyncadd [#allocation6], %s357
          %s359 = sshll.u32 [#allocation7], 4
          %s360 = int_to_ptr.vmem [resolvable:$true] %s359
          %365 = dma.hbm_to_vmem [thread:$0]  %s7, 512, %s360, [#allocation6], 128, 128, 8
        $region40: #{rnn_classifier_2stream_forward.1} parent=11 // pred_fallthru
          _
        // Predicated region
        $region41: #{rnn_classifier_2stream_forward.1} parent=11 // pred_check
          %p366 = pneg %p215
        $region42: #{rnn_classifier_2stream_forward.1} parent=11 // pred_check_branch
          %368 = sbr.rel (%p366) target = $region44
        $region43: #{rnn_classifier_2stream_forward.1} parent=11 // pred_region
          %s370 = ssub.s32 16, 16
          %371 = vsyncadd [#allocation9], %s370
          %s373 = sshll.u32 [#allocation8], 4
          %s374 = int_to_ptr.vmem [resolvable:$true] %s373
          %376 = dma.hbm_to_vmem [thread:$0]  %s8, 16, %s374, [#allocation9]
        $region44: #{rnn_classifier_2stream_forward.1} parent=11 // pred_fallthru
          _
        // Predicated region
        $region45: #{rnn_classifier_2stream_forward.1} parent=11 // pred_check
          %p377 = pneg %p236
        $region46: #{rnn_classifier_2stream_forward.1} parent=11 // pred_check_branch
          %379 = sbr.rel (%p377) target = $region48
        $region47: #{rnn_classifier_2stream_forward.1} parent=11 // pred_region
          _
        $region48: #{rnn_classifier_2stream_forward.1} parent=11 // pred_fallthru
          _
        // Predicated region
        $region49: #{rnn_classifier_2stream_forward.1} parent=11 // pred_check
          %p380 = pneg %p257
        $region50: #{rnn_classifier_2stream_forward.1} parent=11 // pred_check_branch
          %382 = sbr.rel (%p380) target = $region52
        $region51: #{rnn_classifier_2stream_forward.1} parent=11 // pred_region
          %s384 = ssub.s32 16, 16
          %385 = vsyncadd [#allocation9], %s384
          %s387 = sshll.u32 [#allocation10], 4
          %s388 = int_to_ptr.vmem [resolvable:$true] %s387
          %390 = dma.hbm_to_vmem [thread:$0]  %s10, 16, %s388, [#allocation9]
        $region52: #{rnn_classifier_2stream_forward.1} parent=11 // pred_fallthru
          _
        // Predicated region
        $region53: #{rnn_classifier_2stream_forward.1} parent=11 // pred_check
          %p391 = pneg %p278
        $region54: #{rnn_classifier_2stream_forward.1} parent=11 // pred_check_branch
          %393 = sbr.rel (%p391) target = $region56
        $region55: #{rnn_classifier_2stream_forward.1} parent=11 // pred_region
          _
        $region56: #{rnn_classifier_2stream_forward.1} parent=11 // pred_fallthru
          _
      $region12: #{rnn_classifier_2stream_forward.1} parent=5 // pred_fallthru
        _
      %p394 = scmp.lt.s32.totalorder %s21, 8
      // Predicated region
      $region57: #{rnn_classifier_2stream_forward.1} parent=5 // pred_check
        %p395 = pneg %p394
      $region58: #{rnn_classifier_2stream_forward.1} parent=5 // pred_check_branch
        %397 = sbr.rel (%p395) target = $region60
      $region59: #{rnn_classifier_2stream_forward.1} parent=5 // pred_region
        // Predicated region
        $region61: #{rnn_classifier_2stream_forward.1} parent=59 // pred_check
          %p398 = pneg %p41
        $region62: #{rnn_classifier_2stream_forward.1} parent=59 // pred_check_branch
          %400 = sbr.rel (%p398) target = $region64
        $region63: #{rnn_classifier_2stream_forward.1} parent=59 // pred_region
          %p401 = scmp.lt.s32.totalorder %s21, 7
          %s402 = scalar_select %p401, %s21, 7
          %s403 = smul.addr %s402, 8
          %s404 = scalar_lea.vmem %s0, %s403
        $region64: #{rnn_classifier_2stream_forward.1} parent=59 // pred_fallthru
          _
      $region60: #{rnn_classifier_2stream_forward.1} parent=5 // pred_fallthru
        _
      %p405 = scmp.le.s32.totalorder 1, %s21
      %p406 = scmp.lt.s32.totalorder %s21, 9
      %p407 = pnand %p405, %p406
      %p408 = pneg %p407
      // Predicated region
      $region65: #{rnn_classifier_2stream_forward.1} parent=5 // pred_check
        _
      $region66: #{rnn_classifier_2stream_forward.1} parent=5 // pred_check_branch
        %410 = sbr.rel (%p407) target = $region68
      $region67: #{rnn_classifier_2stream_forward.1} parent=5 // pred_region
        %s411 = ssub.s32 %s21, 1
        // Predicated region
        $region69: #{rnn_classifier_2stream_forward.1} parent=67 // pred_check
          %p412 = pneg %p68
        $region70: #{rnn_classifier_2stream_forward.1} parent=67 // pred_check_branch
          %414 = sbr.rel (%p412) target = $region72
        $region71: #{rnn_classifier_2stream_forward.1} parent=67 // pred_region
          %415 = dma.done [#allocation4], 128
        $region72: #{rnn_classifier_2stream_forward.1} parent=67 // pred_fallthru
          _
        // Predicated region
        $region73: #{rnn_classifier_2stream_forward.1} parent=67 // pred_check
          %p416 = pneg %p152
        $region74: #{rnn_classifier_2stream_forward.1} parent=67 // pred_check_branch
          %418 = sbr.rel (%p416) target = $region76
        $region75: #{rnn_classifier_2stream_forward.1} parent=67 // pred_region
          %419 = dma.done [#allocation6], 16
        $region76: #{rnn_classifier_2stream_forward.1} parent=67 // pred_fallthru
          _
        // Predicated region
        $region77: #{rnn_classifier_2stream_forward.1} parent=67 // pred_check
          %p420 = pneg %p194
        $region78: #{rnn_classifier_2stream_forward.1} parent=67 // pred_check_branch
          %422 = sbr.rel (%p420) target = $region80
        $region79: #{rnn_classifier_2stream_forward.1} parent=67 // pred_region
          %423 = dma.done [#allocation6], 512
        $region80: #{rnn_classifier_2stream_forward.1} parent=67 // pred_fallthru
          _
        // Predicated region
        $region81: #{rnn_classifier_2stream_forward.1} parent=67 // pred_check
          %p424 = pneg %p215
        $region82: #{rnn_classifier_2stream_forward.1} parent=67 // pred_check_branch
          %426 = sbr.rel (%p424) target = $region84
        $region83: #{rnn_classifier_2stream_forward.1} parent=67 // pred_region
          %427 = dma.done [#allocation9], 16
        $region84: #{rnn_classifier_2stream_forward.1} parent=67 // pred_fallthru
          _
        // Predicated region
        $region85: #{rnn_classifier_2stream_forward.1} parent=67 // pred_check
          %p428 = pneg %p257
        $region86: #{rnn_classifier_2stream_forward.1} parent=67 // pred_check_branch
          %430 = sbr.rel (%p428) target = $region88
        $region87: #{rnn_classifier_2stream_forward.1} parent=67 // pred_region
          %431 = dma.done [#allocation9], 16
        $region88: #{rnn_classifier_2stream_forward.1} parent=67 // pred_fallthru
          _
        %p432 = scmp.lt.s32.totalorder %s26, 7
        %s433 = scalar_select %p432, %s26, 7
        %s434 = smul.addr %s433, 8
        %s435 = scalar_lea.vmem %s0, %s434
        %p436 = pneg %p47
        %p437 = pneg %p44
        %p438 = pneg %p68
        %p439 = pneg %p65
        %p440 = pneg %p89
        %p441 = pneg %p86
        %p442 = pneg %p110
        %p443 = pneg %p107
        %p444 = pneg %p131
        %p445 = pneg %p128
        %p446 = pneg %p152
        %p447 = pneg %p149
        %p448 = pneg %p173
        %p449 = pneg %p170
        %p450 = pneg %p194
        %p451 = pneg %p191
        %p452 = pneg %p215
        %p453 = pneg %p212
        %p454 = pneg %p236
        %p455 = pneg %p233
        %p456 = pneg %p257
        %p457 = pneg %p254
        %p458 = pneg %p278
        %p459 = pneg %p275
        %p460 = pneg %p304
        %p461 = pneg %p301
        %p462 = scmp.lt.s32.totalorder %s26, 7
        %s463 = scalar_select %p462, %s26, 7
        %s464 = smul.addr %s463, 8
        %s465 = scalar_lea.vmem %s12, %s464
        %p466 = scmp.lt.s32.totalorder %s26, 7
        %s467 = scalar_select %p466, %s26, 7
        %s468 = smul.addr %s467, 8
        %s469 = scalar_lea.vmem %s0, %s468
        %p470 = scmp.lt.s32.totalorder %s26, 7
        %s471 = scalar_select %p470, %s26, 7
        %s472 = smul.addr %s471, 8
        %s473 = scalar_lea.vmem %s12, %s472
        %p474 = scmp.eq.s32.totalorder %s26, 0
        // Predicated region
        $region89: #{rnn_classifier_2stream_forward.1} parent=67 // pred_check
          %p475 = pneg %p474
        $region90: #{rnn_classifier_2stream_forward.1} parent=67 // pred_check_branch
          %477 = sbr.rel (%p475) target = $region92
        $region91: #{rnn_classifier_2stream_forward.1} parent=67 // pred_region
          %v478 = vld [vmem:[#allocation3] sm:$0xff]
          %vm479 = vcmask 261120
          %480 = vst.msk [vmem:[#allocation2] sm:$0xff] %vm479, %v478
        $region92: #{rnn_classifier_2stream_forward.1} parent=67 // pred_fallthru
          _
        %v481 = vld [vmem:[%s469] sm:$0xff]
        %v482 = vld [vmem:[#allocation2] sm:$0xff]
        %v483 = vld [vmem:[%s2] sm:$0xff]
        %v484 = vld [vmem:[%s2 + $0x8] sm:$0xff]
        %v485 = vld [vmem:[%s2 + $0x10] sm:$0xff]
        %v486 = vld [vmem:[%s2 + $0x18] sm:$0xff]
        %v487 = vld [vmem:[%s2 + $0x20] sm:$0x3f]
        %v488 = vld [vmem:[%s3] sm:$0x1]
        %v490 = vlaneseq
        %v491 = vshrl.u32 %v490, 7
        %v492 = vsub.s32 0, %v491
        %v493 = vrot.slane %v488, %v492
        %vm495 = vcmask 310272
        %v497 = vsel %vm495, %v481, 0
        %vm499 = vcmask 1045504
        %v501 = vsel %vm499, %v487, 0
        %503 = vmatprep.subr.mxu0 0.0
        %504 = vmatpush1.msra.mxu0 %v483
        %505 = vmatprep.subr.mxu0 0.0
        %506 = vmatpush1.msra.mxu0 %v484
        %507 = vmatprep.subr.mxu0 0.0
        %508 = vmatpush1.msra.mxu0 %v485
        %509 = vmatprep.subr.mxu0 0.0
        %510 = vmatpush1.msra.mxu0 %v486
        %511 = vmatprep.subr.mxu0 0.0
        %512 = vmatpush1.msra.mxu0 %v501
        %513 = vmatprep.subr.mxu0 0.0
        %514 = vmatpush1.msra.mxu0 0.0
        %515 = vmatprep.subr.mxu0 0.0
        %516 = vmatpush1.msra.mxu0 0.0
        %517 = vmatprep.subr.mxu0 0.0
        %518 = vmatpush1.msra.mxu0 0.0
        %519 = vmatprep.subr.mxu0 0.0
        %520 = vmatpush1.msra.mxu0 0.0
        %521 = vmatprep.subr.mxu0 0.0
        %522 = vmatpush1.msra.mxu0 0.0
        %523 = vmatprep.subr.mxu0 0.0
        %524 = vmatpush1.msra.mxu0 0.0
        %525 = vmatprep.subr.mxu0 0.0
        %526 = vmatpush1.msra.mxu0 0.0
        %527 = vmatprep.subr.mxu0 0.0
        %528 = vmatpush1.msra.mxu0 0.0
        %529 = vmatprep.subr.mxu0 0.0
        %530 = vmatpush1.msra.mxu0 0.0
        %531 = vmatprep.subr.mxu0 0.0
        %532 = vmatpush1.msra.mxu0 0.0
        %533 = vmatprep.subr.mxu0 0.0
        %534 = vmatpush1.msra.mxu0 0.0
        %535 = vmatprep.subr.mxu0 0.0
        %536 = vmatpush1.msra.mxu0 0.0
        %537 = vmatprep.subr.mxu0 0.0
        %538 = vmatpush1.msra.mxu0 0.0
        %539 = vmatprep.subr.mxu0 0.0
        %540 = vmatpush1.msra.mxu0 0.0
        %541 = vmatprep.subr.mxu0 0.0
        %542 = vmatpush1.msra.mxu0 0.0
        %543 = vmatprep.subr.mxu0 0.0
        %544 = vmatpush1.msra.mxu0 0.0
        %545 = vmatprep.subr.mxu0 0.0
        %546 = vmatpush1.msra.mxu0 0.0
        %547 = vmatprep.subr.mxu0 0.0
        %548 = vmatpush1.msra.mxu0 0.0
        %549 = vmatprep.subr.mxu0 0.0
        %550 = vmatpush1.msra.mxu0 0.0
        %551 = vmatprep.subr.mxu0 0.0
        %552 = vmatpush1.msra.mxu0 0.0
        %553 = vmatprep.subr.mxu0 0.0
        %554 = vmatpush1.msra.mxu0 0.0
        %555 = vmatprep.subr.mxu0 0.0
        %556 = vmatpush1.msra.mxu0 0.0
        %557 = vmatprep.subr.mxu0 0.0
        %558 = vmatpush1.msra.mxu0 0.0
        %559 = vmatprep.subr.mxu0 0.0
        %560 = vmatpush1.msra.mxu0 0.0
        %561 = vmatprep.subr.mxu0 0.0
        %562 = vmatpush1.msra.mxu0 0.0
        %563 = vmatprep.subr.mxu0 0.0
        %564 = vmatpush1.msra.mxu0 0.0
        %565 = vmatprep.subr.mxu0 0.0
        %566 = vmatpush1.msra.mxu0 0.0
        %567 = vmatprep.mubr.f32.mxu0 0.0
        %568 = vmatmul.mubr.f32.gmra.mrb[0].mxu0 %v497
        %v569 = vpop.f32.mrb[0].mxu0
        %v570 = vadd.f32 %v493, %v569
        %v571 = vpop.f32.mrb[0].mxu0
        %572 = vdwg.mxu0
        %vm573 = vcmp.gt.f32.partialorder %v570, 0.0
        %v574 = vmul.f32 %v570, 0.1
        %v575 = vsel %vm573, %v570, %v574
        %v576 = vld [vmem:[%s4] sm:$0xff]
        %v577 = vld [vmem:[%s4 + $0x8] sm:$0xff]
        %v578 = vld [vmem:[%s4 + $0x10] sm:$0xff]
        %v579 = vld [vmem:[%s4 + $0x18] sm:$0xff]
        %v580 = vld [vmem:[#allocation5] sm:$0x1]
        %v582 = vlaneseq
        %v583 = vshrl.u32 %v582, 7
        %v584 = vsub.s32 0, %v583
        %v585 = vrot.slane %v580, %v584
        %vm587 = vcmask 261120
        %v589 = vsel %vm587, %v575, 0
        %591 = vmatprep.subr.mxu0 0.0
        %592 = vmatpush1.msra.mxu0 %v576
        %593 = vmatprep.subr.mxu0 0.0
        %594 = vmatpush1.msra.mxu0 %v577
        %595 = vmatprep.subr.mxu0 0.0
        %596 = vmatpush1.msra.mxu0 %v578
        %597 = vmatprep.subr.mxu0 0.0
        %598 = vmatpush1.msra.mxu0 %v579
        %599 = vmatprep.subr.mxu0 0.0
        %600 = vmatpush1.msra.mxu0 0.0
        %601 = vmatprep.subr.mxu0 0.0
        %602 = vmatpush1.msra.mxu0 0.0
        %603 = vmatprep.subr.mxu0 0.0
        %604 = vmatpush1.msra.mxu0 0.0
        %605 = vmatprep.subr.mxu0 0.0
        %606 = vmatpush1.msra.mxu0 0.0
        %607 = vmatprep.subr.mxu0 0.0
        %608 = vmatpush1.msra.mxu0 0.0
        %609 = vmatprep.subr.mxu0 0.0
        %610 = vmatpush1.msra.mxu0 0.0
        %611 = vmatprep.subr.mxu0 0.0
        %612 = vmatpush1.msra.mxu0 0.0
        %613 = vmatprep.subr.mxu0 0.0
        %614 = vmatpush1.msra.mxu0 0.0
        %615 = vmatprep.subr.mxu0 0.0
        %616 = vmatpush1.msra.mxu0 0.0
        %617 = vmatprep.subr.mxu0 0.0
        %618 = vmatpush1.msra.mxu0 0.0
        %619 = vmatprep.subr.mxu0 0.0
        %620 = vmatpush1.msra.mxu0 0.0
        %621 = vmatprep.subr.mxu0 0.0
        %622 = vmatpush1.msra.mxu0 0.0
        %623 = vmatprep.subr.mxu0 0.0
        %624 = vmatpush1.msra.mxu0 0.0
        %625 = vmatprep.subr.mxu0 0.0
        %626 = vmatpush1.msra.mxu0 0.0
        %627 = vmatprep.subr.mxu0 0.0
        %628 = vmatpush1.msra.mxu0 0.0
        %629 = vmatprep.subr.mxu0 0.0
        %630 = vmatpush1.msra.mxu0 0.0
        %631 = vmatprep.subr.mxu0 0.0
        %632 = vmatpush1.msra.mxu0 0.0
        %633 = vmatprep.subr.mxu0 0.0
        %634 = vmatpush1.msra.mxu0 0.0
        %635 = vmatprep.subr.mxu0 0.0
        %636 = vmatpush1.msra.mxu0 0.0
        %637 = vmatprep.subr.mxu0 0.0
        %638 = vmatpush1.msra.mxu0 0.0
        %639 = vmatprep.subr.mxu0 0.0
        %640 = vmatpush1.msra.mxu0 0.0
        %641 = vmatprep.subr.mxu0 0.0
        %642 = vmatpush1.msra.mxu0 0.0
        %643 = vmatprep.subr.mxu0 0.0
        %644 = vmatpush1.msra.mxu0 0.0
        %645 = vmatprep.subr.mxu0 0.0
        %646 = vmatpush1.msra.mxu0 0.0
        %647 = vmatprep.subr.mxu0 0.0
        %648 = vmatpush1.msra.mxu0 0.0
        %649 = vmatprep.subr.mxu0 0.0
        %650 = vmatpush1.msra.mxu0 0.0
        %651 = vmatprep.subr.mxu0 0.0
        %652 = vmatpush1.msra.mxu0 0.0
        %653 = vmatprep.subr.mxu0 0.0
        %654 = vmatpush1.msra.mxu0 0.0
        %655 = vmatprep.mubr.f32.mxu0 0.0
        %656 = vmatmul.mubr.f32.gmra.mrb[0].mxu0 %v589
        %v657 = vpop.f32.mrb[0].mxu0
        %v658 = vadd.f32 %v585, %v657
        %v659 = vpop.f32.mrb[0].mxu0
        %660 = vdwg.mxu0
        %vm661 = vcmp.gt.f32.partialorder %v658, 0.0
        %v662 = vmul.f32 %v658, 0.1
        %v663 = vsel %vm661, %v658, %v662
        %v664 = vld [vmem:[%s6] sm:$0xff]
        %v665 = vld [vmem:[%s6 + $0x8] sm:$0xff]
        %v666 = vld [vmem:[%s6 + $0x10] sm:$0xff]
        %v667 = vld [vmem:[%s6 + $0x18] sm:$0xff]
        %v668 = vld [vmem:[#allocation7] sm:$0xff]
        %v669 = vld [vmem:[#allocation7 + $0x8] sm:$0xff]
        %v670 = vld [vmem:[#allocation7 + $0x10] sm:$0xff]
        %v671 = vld [vmem:[#allocation7 + $0x18] sm:$0xff]
        %v673 = vsel %vm587, %v482, 0
        %675 = vmatprep.subr.mxu0 0.0
        %676 = vmatpush1.msra.mxu0 %v668
        %677 = vmatprep.subr.mxu0 0.0
        %678 = vmatpush1.msra.mxu0 %v669
        %679 = vmatprep.subr.mxu0 0.0
        %680 = vmatpush1.msra.mxu0 %v670
        %681 = vmatprep.subr.mxu0 0.0
        %682 = vmatpush1.msra.mxu0 %v671
        %683 = vmatprep.subr.mxu0 0.0
        %684 = vmatpush1.msra.mxu0 0.0
        %685 = vmatprep.subr.mxu0 0.0
        %686 = vmatpush1.msra.mxu0 0.0
        %687 = vmatprep.subr.mxu0 0.0
        %688 = vmatpush1.msra.mxu0 0.0
        %689 = vmatprep.subr.mxu0 0.0
        %690 = vmatpush1.msra.mxu0 0.0
        %691 = vmatprep.subr.mxu0 0.0
        %692 = vmatpush1.msra.mxu0 0.0
        %693 = vmatprep.subr.mxu0 0.0
        %694 = vmatpush1.msra.mxu0 0.0
        %695 = vmatprep.subr.mxu0 0.0
        %696 = vmatpush1.msra.mxu0 0.0
        %697 = vmatprep.subr.mxu0 0.0
        %698 = vmatpush1.msra.mxu0 0.0
        %699 = vmatprep.subr.mxu0 0.0
        %700 = vmatpush1.msra.mxu0 0.0
        %701 = vmatprep.subr.mxu0 0.0
        %702 = vmatpush1.msra.mxu0 0.0
        %703 = vmatprep.subr.mxu0 0.0
        %704 = vmatpush1.msra.mxu0 0.0
        %705 = vmatprep.subr.mxu0 0.0
        %706 = vmatpush1.msra.mxu0 0.0
        %707 = vmatprep.subr.mxu0 0.0
        %708 = vmatpush1.msra.mxu0 0.0
        %709 = vmatprep.subr.mxu0 0.0
        %710 = vmatpush1.msra.mxu0 0.0
        %711 = vmatprep.subr.mxu0 0.0
        %712 = vmatpush1.msra.mxu0 0.0
        %713 = vmatprep.subr.mxu0 0.0
        %714 = vmatpush1.msra.mxu0 0.0
        %715 = vmatprep.subr.mxu0 0.0
        %716 = vmatpush1.msra.mxu0 0.0
        %717 = vmatprep.subr.mxu0 0.0
        %718 = vmatpush1.msra.mxu0 0.0
        %719 = vmatprep.subr.mxu0 0.0
        %720 = vmatpush1.msra.mxu0 0.0
        %721 = vmatprep.subr.mxu0 0.0
        %722 = vmatpush1.msra.mxu0 0.0
        %723 = vmatprep.subr.mxu0 0.0
        %724 = vmatpush1.msra.mxu0 0.0
        %725 = vmatprep.subr.mxu0 0.0
        %726 = vmatpush1.msra.mxu0 0.0
        %727 = vmatprep.subr.mxu0 0.0
        %728 = vmatpush1.msra.mxu0 0.0
        %729 = vmatprep.subr.mxu0 0.0
        %730 = vmatpush1.msra.mxu0 0.0
        %731 = vmatprep.subr.mxu0 0.0
        %732 = vmatpush1.msra.mxu0 0.0
        %733 = vmatprep.subr.mxu0 0.0
        %734 = vmatpush1.msra.mxu0 0.0
        %735 = vmatprep.subr.mxu0 0.0
        %736 = vmatpush1.msra.mxu0 0.0
        %737 = vmatprep.subr.mxu0 0.0
        %738 = vmatpush1.msra.mxu0 0.0
        %739 = vmatprep.mubr.f32.mxu0 0.0
        %740 = vmatmul.mubr.f32.gmra.mrb[0].mxu0 %v673
        %v741 = vpop.f32.mrb[0].mxu0
        %v742 = vadd.f32 0.0, %v741
        %v743 = vpop.f32.mrb[0].mxu0
        %744 = vdwg.mxu0
        %v746 = vsel %vm587, %v663, 0
        %748 = vmatprep.subr.mxu0 0.0
        %749 = vmatpush1.msra.mxu0 %v664
        %750 = vmatprep.subr.mxu0 0.0
        %751 = vmatpush1.msra.mxu0 %v665
        %752 = vmatprep.subr.mxu0 0.0
        %753 = vmatpush1.msra.mxu0 %v666
        %754 = vmatprep.subr.mxu0 0.0
        %755 = vmatpush1.msra.mxu0 %v667
        %756 = vmatprep.subr.mxu0 0.0
        %757 = vmatpush1.msra.mxu0 0.0
        %758 = vmatprep.subr.mxu0 0.0
        %759 = vmatpush1.msra.mxu0 0.0
        %760 = vmatprep.subr.mxu0 0.0
        %761 = vmatpush1.msra.mxu0 0.0
        %762 = vmatprep.subr.mxu0 0.0
        %763 = vmatpush1.msra.mxu0 0.0
        %764 = vmatprep.subr.mxu0 0.0
        %765 = vmatpush1.msra.mxu0 0.0
        %766 = vmatprep.subr.mxu0 0.0
        %767 = vmatpush1.msra.mxu0 0.0
        %768 = vmatprep.subr.mxu0 0.0
        %769 = vmatpush1.msra.mxu0 0.0
        %770 = vmatprep.subr.mxu0 0.0
        %771 = vmatpush1.msra.mxu0 0.0
        %772 = vmatprep.subr.mxu0 0.0
        %773 = vmatpush1.msra.mxu0 0.0
        %774 = vmatprep.subr.mxu0 0.0
        %775 = vmatpush1.msra.mxu0 0.0
        %776 = vmatprep.subr.mxu0 0.0
        %777 = vmatpush1.msra.mxu0 0.0
        %778 = vmatprep.subr.mxu0 0.0
        %779 = vmatpush1.msra.mxu0 0.0
        %780 = vmatprep.subr.mxu0 0.0
        %781 = vmatpush1.msra.mxu0 0.0
        %782 = vmatprep.subr.mxu0 0.0
        %783 = vmatpush1.msra.mxu0 0.0
        %784 = vmatprep.subr.mxu0 0.0
        %785 = vmatpush1.msra.mxu0 0.0
        %786 = vmatprep.subr.mxu0 0.0
        %787 = vmatpush1.msra.mxu0 0.0
        %788 = vmatprep.subr.mxu0 0.0
        %789 = vmatpush1.msra.mxu0 0.0
        %790 = vmatprep.subr.mxu0 0.0
        %791 = vmatpush1.msra.mxu0 0.0
        %792 = vmatprep.subr.mxu0 0.0
        %793 = vmatpush1.msra.mxu0 0.0
        %794 = vmatprep.subr.mxu0 0.0
        %795 = vmatpush1.msra.mxu0 0.0
        %796 = vmatprep.subr.mxu0 0.0
        %797 = vmatpush1.msra.mxu0 0.0
        %798 = vmatprep.subr.mxu0 0.0
        %799 = vmatpush1.msra.mxu0 0.0
        %800 = vmatprep.subr.mxu0 0.0
        %801 = vmatpush1.msra.mxu0 0.0
        %802 = vmatprep.subr.mxu0 0.0
        %803 = vmatpush1.msra.mxu0 0.0
        %804 = vmatprep.subr.mxu0 0.0
        %805 = vmatpush1.msra.mxu0 0.0
        %806 = vmatprep.subr.mxu0 0.0
        %807 = vmatpush1.msra.mxu0 0.0
        %808 = vmatprep.subr.mxu0 0.0
        %809 = vmatpush1.msra.mxu0 0.0
        %810 = vmatprep.subr.mxu0 0.0
        %811 = vmatpush1.msra.mxu0 0.0
        %812 = vmatprep.mubr.f32.mxu0 0.0
        %813 = vmatmul.mubr.f32.gmra.mrb[0].mxu0 %v746
        %v814 = vpop.f32.mrb[0].mxu0
        %v815 = vadd.f32 %v742, %v814
        %v816 = vpop.f32.mrb[0].mxu0
        %817 = vdwg.mxu0
        %v818 = vld [vmem:[#allocation8] sm:$0x1]
        %v820 = vlaneseq
        %v821 = vshrl.u32 %v820, 7
        %v822 = vsub.s32 0, %v821
        %v823 = vrot.slane %v818, %v822
        %v825 = vadd.f32 %v815, %v823
        %v826 = vtanh.pop %v825
        %827 = vst.msk [vmem:[#allocation2] sm:$0xff] %vm587, %v826
        %v828 = vld [vmem:[%s9] sm:$0xff]
        %v829 = vld [vmem:[%s9 + $0x8] sm:$0xff]
        %v830 = vld [vmem:[%s9 + $0x10] sm:$0xff]
        %v831 = vld [vmem:[%s9 + $0x18] sm:$0xff]
        %v832 = vld [vmem:[#allocation10] sm:$0x1]
        %v834 = vlaneseq
        %v835 = vshrl.u32 %v834, 7
        %v836 = vsub.s32 0, %v835
        %v837 = vrot.slane %v832, %v836
        %840 = vrot.lane.b32.xlu0 %v825, 96
        %v841 = vpop.permute.xlu0 %840
        %v842 = vsel %vm587, %v841, 0
        %844 = vmatprep.subr.mxu0 0.0
        %845 = vmatpush1.msra.mxu0 %v828
        %846 = vmatprep.subr.mxu0 0.0
        %847 = vmatpush1.msra.mxu0 %v829
        %848 = vmatprep.subr.mxu0 0.0
        %849 = vmatpush1.msra.mxu0 %v830
        %850 = vmatprep.subr.mxu0 0.0
        %851 = vmatpush1.msra.mxu0 %v831
        %852 = vmatprep.subr.mxu0 0.0
        %853 = vmatpush1.msra.mxu0 0.0
        %854 = vmatprep.subr.mxu0 0.0
        %855 = vmatpush1.msra.mxu0 0.0
        %856 = vmatprep.subr.mxu0 0.0
        %857 = vmatpush1.msra.mxu0 0.0
        %858 = vmatprep.subr.mxu0 0.0
        %859 = vmatpush1.msra.mxu0 0.0
        %860 = vmatprep.subr.mxu0 0.0
        %861 = vmatpush1.msra.mxu0 0.0
        %862 = vmatprep.subr.mxu0 0.0
        %863 = vmatpush1.msra.mxu0 0.0
        %864 = vmatprep.subr.mxu0 0.0
        %865 = vmatpush1.msra.mxu0 0.0
        %866 = vmatprep.subr.mxu0 0.0
        %867 = vmatpush1.msra.mxu0 0.0
        %868 = vmatprep.subr.mxu0 0.0
        %869 = vmatpush1.msra.mxu0 0.0
        %870 = vmatprep.subr.mxu0 0.0
        %871 = vmatpush1.msra.mxu0 0.0
        %872 = vmatprep.subr.mxu0 0.0
        %873 = vmatpush1.msra.mxu0 0.0
        %874 = vmatprep.subr.mxu0 0.0
        %875 = vmatpush1.msra.mxu0 0.0
        %876 = vmatprep.subr.mxu0 0.0
        %877 = vmatpush1.msra.mxu0 0.0
        %878 = vmatprep.subr.mxu0 0.0
        %879 = vmatpush1.msra.mxu0 0.0
        %880 = vmatprep.subr.mxu0 0.0
        %881 = vmatpush1.msra.mxu0 0.0
        %882 = vmatprep.subr.mxu0 0.0
        %883 = vmatpush1.msra.mxu0 0.0
        %884 = vmatprep.subr.mxu0 0.0
        %885 = vmatpush1.msra.mxu0 0.0
        %886 = vmatprep.subr.mxu0 0.0
        %887 = vmatpush1.msra.mxu0 0.0
        %888 = vmatprep.subr.mxu0 0.0
        %889 = vmatpush1.msra.mxu0 0.0
        %890 = vmatprep.subr.mxu0 0.0
        %891 = vmatpush1.msra.mxu0 0.0
        %892 = vmatprep.subr.mxu0 0.0
        %893 = vmatpush1.msra.mxu0 0.0
        %894 = vmatprep.subr.mxu0 0.0
        %895 = vmatpush1.msra.mxu0 0.0
        %896 = vmatprep.subr.mxu0 0.0
        %897 = vmatpush1.msra.mxu0 0.0
        %898 = vmatprep.subr.mxu0 0.0
        %899 = vmatpush1.msra.mxu0 0.0
        %900 = vmatprep.subr.mxu0 0.0
        %901 = vmatpush1.msra.mxu0 0.0
        %902 = vmatprep.subr.mxu0 0.0
        %903 = vmatpush1.msra.mxu0 0.0
        %904 = vmatprep.subr.mxu0 0.0
        %905 = vmatpush1.msra.mxu0 0.0
        %906 = vmatprep.subr.mxu0 0.0
        %907 = vmatpush1.msra.mxu0 0.0
        %908 = vmatprep.mubr.f32.mxu0 0.0
        %909 = vmatmul.mubr.f32.gmra.mrb[0].mxu0 %v842
        %v910 = vpop.f32.mrb[0].mxu0
        %v911 = vadd.f32 %v837, %v910
        %v912 = vpop.f32.mrb[0].mxu0
        %913 = vdwg.mxu0
        %vm914 = vcmp.gt.f32.partialorder %v911, 0.0
        %v915 = vmul.f32 %v911, 0.1
        %v916 = vsel %vm914, %v911, %v915
        %v917 = vld [vmem:[%s11] sm:$0xff]
        %v918 = vld [vmem:[%s11 + $0x8] sm:$0xff]
        %vm919 = vcmask 130048
        %v921 = vsel %vm919, %v916, 0
        %923 = vmatprep.subr.mxu0 0.0
        %924 = vmatpush1.msra.mxu0 %v917
        %925 = vmatprep.subr.mxu0 0.0
        %926 = vmatpush1.msra.mxu0 %v918
        %927 = vmatprep.subr.mxu0 0.0
        %928 = vmatpush1.msra.mxu0 0.0
        %929 = vmatprep.subr.mxu0 0.0
        %930 = vmatpush1.msra.mxu0 0.0
        %931 = vmatprep.subr.mxu0 0.0
        %932 = vmatpush1.msra.mxu0 0.0
        %933 = vmatprep.subr.mxu0 0.0
        %934 = vmatpush1.msra.mxu0 0.0
        %935 = vmatprep.subr.mxu0 0.0
        %936 = vmatpush1.msra.mxu0 0.0
        %937 = vmatprep.subr.mxu0 0.0
        %938 = vmatpush1.msra.mxu0 0.0
        %939 = vmatprep.subr.mxu0 0.0
        %940 = vmatpush1.msra.mxu0 0.0
        %941 = vmatprep.subr.mxu0 0.0
        %942 = vmatpush1.msra.mxu0 0.0
        %943 = vmatprep.subr.mxu0 0.0
        %944 = vmatpush1.msra.mxu0 0.0
        %945 = vmatprep.subr.mxu0 0.0
        %946 = vmatpush1.msra.mxu0 0.0
        %947 = vmatprep.subr.mxu0 0.0
        %948 = vmatpush1.msra.mxu0 0.0
        %949 = vmatprep.subr.mxu0 0.0
        %950 = vmatpush1.msra.mxu0 0.0
        %951 = vmatprep.subr.mxu0 0.0
        %952 = vmatpush1.msra.mxu0 0.0
        %953 = vmatprep.subr.mxu0 0.0
        %954 = vmatpush1.msra.mxu0 0.0
        %955 = vmatprep.subr.mxu0 0.0
        %956 = vmatpush1.msra.mxu0 0.0
        %957 = vmatprep.subr.mxu0 0.0
        %958 = vmatpush1.msra.mxu0 0.0
        %959 = vmatprep.subr.mxu0 0.0
        %960 = vmatpush1.msra.mxu0 0.0
        %961 = vmatprep.subr.mxu0 0.0
        %962 = vmatpush1.msra.mxu0 0.0
        %963 = vmatprep.subr.mxu0 0.0
        %964 = vmatpush1.msra.mxu0 0.0
        %965 = vmatprep.subr.mxu0 0.0
        %966 = vmatpush1.msra.mxu0 0.0
        %967 = vmatprep.subr.mxu0 0.0
        %968 = vmatpush1.msra.mxu0 0.0
        %969 = vmatprep.subr.mxu0 0.0
        %970 = vmatpush1.msra.mxu0 0.0
        %971 = vmatprep.subr.mxu0 0.0
        %972 = vmatpush1.msra.mxu0 0.0
        %973 = vmatprep.subr.mxu0 0.0
        %974 = vmatpush1.msra.mxu0 0.0
        %975 = vmatprep.subr.mxu0 0.0
        %976 = vmatpush1.msra.mxu0 0.0
        %977 = vmatprep.subr.mxu0 0.0
        %978 = vmatpush1.msra.mxu0 0.0
        %979 = vmatprep.subr.mxu0 0.0
        %980 = vmatpush1.msra.mxu0 0.0
        %981 = vmatprep.subr.mxu0 0.0
        %982 = vmatpush1.msra.mxu0 0.0
        %983 = vmatprep.subr.mxu0 0.0
        %984 = vmatpush1.msra.mxu0 0.0
        %985 = vmatprep.subr.mxu0 0.0
        %986 = vmatpush1.msra.mxu0 0.0
        %987 = vmatprep.mubr.f32.mxu0 0.0
        %988 = vmatmul.mubr.f32.gmra.mrb[0].mxu0 %v921
        %v989 = vpop.f32.mrb[0].mxu0
        %v990 = vadd.f32 0.0, %v989
        %v991 = vpop.f32.mrb[0].mxu0
        %992 = vdwg.mxu0
        %vm993 = vcmask 64512
        %994 = vst.msk [vmem:[%s473] sm:$0xff] %vm993, %v990
        %995 = vrot.lane.b32.xlu0 %v575, 120
        %v996 = vpop.permute.xlu0 %995
        %vm998 = vcmask 195648
        %999 = vst.msk [vmem:[%s473] sm:$0xff] %vm998, %v996
        %1001 = vrot.lane.b32.xlu0 %v911, 24
        %v1002 = vpop.permute.xlu0 %1001
        %vm1004 = vcmask 326848
        %1005 = vst.msk [vmem:[%s473] sm:$0xff] %vm1004, %v1002
        %1007 = vrot.lane.b32.xlu0 %v826, 40
        %v1008 = vpop.permute.xlu0 %1007
        %vm1010 = vcmask 589120
        %1011 = vst.msk [vmem:[%s473] sm:$0xff] %vm1010, %v1008
        %1012 = vrot.lane.b32.xlu0 %v825, 40
        %v1013 = vpop.permute.xlu0 %1012
        %vm1015 = vcmask 851520
        %1016 = vst.msk [vmem:[%s473] sm:$0xff] %vm1015, %v1013
        %1017 = vrot.lane.b32.xlu0 %v916, 104
        %v1018 = vpop.permute.xlu0 %1017
        %vm1020 = vcmask 982848
        %1021 = vst.msk [vmem:[%s473] sm:$0xff] %vm1020, %v1018
        %vm1022 = vcmask 1048512
        %1023 = vst.msk [vmem:[%s473] sm:$0xff] %vm1022, 0.0
        %p1024 = scmp.lt.s32.totalorder %s26, 7
        %s1025 = scalar_select %p1024, %s26, 7
        %s1026 = smul.addr %s1025, 8
        %s1027 = scalar_lea.vmem %s12, %s1026
        // Predicated region
        $region93: #{rnn_classifier_2stream_forward.1} parent=67 // pred_check
          %p1028 = pneg %p301
        $region94: #{rnn_classifier_2stream_forward.1} parent=67 // pred_check_branch
          %1030 = sbr.rel (%p1028) target = $region96
        $region95: #{rnn_classifier_2stream_forward.1} parent=67 // pred_region
          _
        $region96: #{rnn_classifier_2stream_forward.1} parent=67 // pred_fallthru
          _
      $region68: #{rnn_classifier_2stream_forward.1} parent=5 // pred_fallthru
        _
      %p1031 = scmp.le.s32.totalorder 2, %s21
      // Predicated region
      $region97: #{rnn_classifier_2stream_forward.1} parent=5 // pred_check
        %p1032 = pneg %p1031
      $region98: #{rnn_classifier_2stream_forward.1} parent=5 // pred_check_branch
        %1034 = sbr.rel (%p1032) target = $region100
      $region99: #{rnn_classifier_2stream_forward.1} parent=5 // pred_region
        %s1035 = ssub.s32 %s21, 2
        // Predicated region
        $region101: #{rnn_classifier_2stream_forward.1} parent=99 // pred_check
          %p1036 = pneg %p307
        $region102: #{rnn_classifier_2stream_forward.1} parent=99 // pred_check_branch
          %1038 = sbr.rel (%p1036) target = $region104
        $region103: #{rnn_classifier_2stream_forward.1} parent=99 // pred_region
          %p1039 = scmp.lt.s32.totalorder %s27, 7
          %s1040 = scalar_select %p1039, %s27, 7
          %s1041 = smul.addr %s1040, 8
          %s1042 = scalar_lea.vmem %s12, %s1041
        $region104: #{rnn_classifier_2stream_forward.1} parent=99 // pred_fallthru
          _
      $region100: #{rnn_classifier_2stream_forward.1} parent=5 // pred_fallthru
        _
    $region6: #{rnn_classifier_2stream_forward.1} parent=1 // loop_footer
      %s25 = sadd.s32 1, %s21
    $region7: #{rnn_classifier_2stream_forward.1} parent=1 // loop_footer_branch
      %20 = sbr.rel target = $region3
    $region8: #{rnn_classifier_2stream_forward.1} parent=1 // loop_exit
      _
    %1043 = vsyncpa [#allocation4], 1
    %s1044 = scalar_lea.sflag [#allocation4], 1
    %1045 = vsyncpa %s1044, 1
    %1046 = vsyncpa [#allocation6], 1
    %1047 = vsyncpa [#allocation9], 1

</llo_original>
